<compile_context>
chip_gen: v6e
topology: v6e:2x2x1
jax: 0.10.0
libtpu: 0.0.40
codegen_flags: <defaults>
</compile_context>

<pallas_src>
import jax
import jax.numpy as jnp
from jax.experimental import pallas as pl
from jax.experimental.pallas import tpu as pltpu

LANE = 128


def _round_up(a: int, b: int) -> int:
    return ((a + b - 1) // b) * b


def _sublane_granularity(dtype) -> int:
    # Native packed tiles: (8,128) for 4-byte, (16,128) for 2-byte, (32,128) for 1-byte.
    itemsize = jnp.dtype(dtype).itemsize
    return {4: 8, 2: 16, 1: 32}.get(itemsize, 8)


def _block_budget_bytes() -> int:
    """Per-block VMEM budget, derived from the chip generation.

    Scoped-VMEM defaults: v5e 16 MiB, v6e 32 MiB, v7x 32 MiB (of 64 MiB phys).
    One block = scoped_default / 8 so that (2 arrays) x (2 pipeline buffers)
    sits at ~half the scoped limit -> 2 MiB (v5e/unknown), 4 MiB (v6e/v7x).
    """
    scoped = 16 * 1024 * 1024
    try:
        kind = jax.devices()[0].device_kind.lower()
        if ("v6" in kind) or ("v7" in kind) or ("tpu7" in kind) or ("7x" in kind):
            scoped = 32 * 1024 * 1024
    except Exception:
        pass  # conservative default keeps v5e (and anything unknown) safe
    return scoped // 8


def _softshk_kernel(l_ref, x_ref, o_ref):
    # l_ref: (1,) f32 threshold in SMEM; x_ref/o_ref: (rows_pb, cols_pb) VMEM tiles.
    xv = x_ref[...]
    l = l_ref[0].astype(xv.dtype)
    # softshrink(x, l) = x - clamp(x, -l, l)
    #   == relu(x - l) - relu(-x - l) for the (non-negative) shrinkage threshold
    #   this module uses; 3 VALU ops per vreg instead of ~5.
    o_ref[...] = xv - jnp.clip(xv, -l, l)


def soft_shk(x, l):
    """Pallas TPU implementation of SoftShk.forward(x, l).

    x: jnp array (any shape, e.g. NCHW), l: python/jnp scalar threshold (>= 0).
    Returns an array of the same shape/dtype as x.
    """
    orig_shape = x.shape
    dtype = x.dtype
    total = x.size
    if total == 0:
        return x

    # Collapse LEADING dims only -> (R, C) with C = original last dim.  This
    # preserves the lane (minormost) dim, so for typical shapes it is a pure
    # bitcast and never adds a relayout/pad/slice pass over the tensor.
    if x.ndim >= 2:
        C = orig_shape[-1]
        R = total // C
    else:
        C = total
        R = 1
    slab = x.reshape(R, C)

    itemsize = jnp.dtype(dtype).itemsize
    sub = _sublane_granularity(dtype)
    budget = _block_budget_bytes()

    # Column blocking: account for the lane-padded footprint (VMEM pads the
    # last dim up to 128 lanes).  Use the full width when it fits; otherwise
    # chunk in multiples of 128 lanes (partial last column block is masked).
    padded_C = _round_up(C, LANE)
    if padded_C * sub * itemsize <= budget:
        cols_pb = C
        cols_padded = padded_C
    else:
        cols_pb = max(LANE, (budget // (sub * itemsize)) // LANE * LANE)
        cols_padded = cols_pb

    # Row blocking: as many sublane-granules as fit in the budget.
    rows_pb = max(sub, (budget // (cols_padded * itemsize)) // sub * sub)
    if rows_pb >= R:
        rows_pb = R  # single full-extent row block (always a legal block dim)

    grid_r = pl.cdiv(R, rows_pb)
    grid_c = pl.cdiv(C, cols_pb)

    # v7x megacore: a splittable slab should produce >= 2 grid steps so both
    # TensorCores stream in parallel (harmless extra step on 1-TC chips).
    if grid_r * grid_c < 2 and R > sub:
        rows_pb = _round_up(pl.cdiv(R, 2), sub)
        grid_r = pl.cdiv(R, rows_pb)

    l_arr = jnp.asarray(l, dtype=jnp.float32).reshape((1,))

    out_slab = pl.pallas_call(
        _softshk_kernel,
        out_shape=jax.ShapeDtypeStruct((R, C), dtype),
        grid=(grid_r, grid_c),
        in_specs=[
            pl.BlockSpec(memory_space=pltpu.MemorySpace.SMEM),        # scalar threshold
            pl.BlockSpec((rows_pb, cols_pb), lambda i, j: (i, j)),    # x tile
        ],
        out_specs=pl.BlockSpec((rows_pb, cols_pb), lambda i, j: (i, j)),
        compiler_params=pltpu.CompilerParams(
            dimension_semantics=("parallel", "parallel"),
        ),
        cost_estimate=pl.CostEstimate(
            flops=2 * total,
            transcendentals=0,
            bytes_accessed=2 * total * itemsize,
        ),
    )(l_arr, slab)

    return out_slab.reshape(orig_shape)


def soft_shk_ref(x, l):
    # Pure-JAX reference matching the PyTorch forward exactly.
    zero = jnp.zeros((), dtype=x.dtype)
    xl = jnp.asarray(l, dtype=x.dtype)
    return jnp.maximum(x - xl, zero) - jnp.maximum(-x - xl, zero)


if __name__ == "__main__":
    key = jax.random.PRNGKey(0)
    kx, kb, ku = jax.random.split(key, 3)

    # Primary test: small NCHW feature map (bitcast leading-collapse path).
    x = jax.random.normal(kx, (2, 4, 16, 16), dtype=jnp.float32)
    l = jnp.float32(0.1)
    out = jax.block_until_ready(soft_shk(x, l))
    ref = soft_shk_ref(x, l)
    assert out.shape == x.shape and out.dtype == x.dtype
    assert jnp.allclose(out, ref, atol=1e-6, rtol=1e-6), "f32 mismatch vs reference"

    # bf16 path (dtype-aware 16-row sublane granularity).
    xb = jax.random.normal(kb, (2, 4, 16, 16), dtype=jnp.bfloat16)
    outb = jax.block_until_ready(soft_shk(xb, jnp.bfloat16(0.1)))
    refb = soft_shk_ref(xb, jnp.bfloat16(0.1))
    assert outb.shape == xb.shape and outb.dtype == xb.dtype
    assert jnp.allclose(outb.astype(jnp.float32), refb.astype(jnp.float32),
                        atol=1e-2, rtol=1e-2), "bf16 mismatch vs reference"

    # Unaligned shape (no dim a multiple of 128): runs through masked partial
    # blocks, with no pad / slice passes.
    xu = jax.random.normal(ku, (3, 5, 7), dtype=jnp.float32)
    outu = jax.block_until_ready(soft_shk(xu, l))
    refu = soft_shk_ref(xu, l)
    assert outu.shape == xu.shape and outu.dtype == xu.dtype
    assert jnp.allclose(outu, refu, atol=1e-6, rtol=1e-6), "unaligned-path mismatch vs reference"

    print("KERNEL_OK")
</pallas_src>

<mosaic_0001>
module attributes {stable_mosaic.version = 11 : i64} {
  func.func @_softshk_kernel(%arg0: i32, %arg1: i32, %arg2: memref<1xf32, #tpu.memory_space<smem>>, %arg3: memref<64x16xf32, #tpu.memory_space<vmem>>, %arg4: memref<64x16xf32, #tpu.memory_space<vmem>>) attributes {dimension_semantics = [#tpu.dimension_semantics<parallel>, #tpu.dimension_semantics<parallel>], iteration_bounds = array<i64: 2, 1>, scalar_prefetch = 0 : i64, scratch_operands = 0 : i64, tpu.core_type = #tpu.core_type<tc>, window_params = [{transform_indices = @transform_0, window_bounds = array<i64: 1>}, {transform_indices = @transform_1, window_bounds = array<i64: 64, 16>}, {transform_indices = @transform_2, window_bounds = array<i64: 64, 16>}]} {
    %c0 = arith.constant 0 : index
    %c0_0 = arith.constant 0 : index
    %0 = vector.load %arg3[%c0, %c0_0] : memref<64x16xf32, #tpu.memory_space<vmem>>, vector<64x16xf32>
    %c0_1 = arith.constant 0 : index
    %1 = memref.load %arg2[%c0_1] : memref<1xf32, #tpu.memory_space<smem>>
    %cst = arith.constant 0.000000e+00 : f32
    %2 = arith.subf %cst, %1 : f32
    %3 = vector.broadcast %2 : f32 to vector<64x16xf32>
    %4 = arith.maximumf %3, %0 : vector<64x16xf32>
    %5 = vector.broadcast %1 : f32 to vector<64x16xf32>
    %6 = arith.minimumf %5, %4 : vector<64x16xf32>
    %7 = arith.subf %0, %6 : vector<64x16xf32>
    %c0_2 = arith.constant 0 : index
    %c0_3 = arith.constant 0 : index
    %8 = vector.load %arg4[%c0_2, %c0_3] : memref<64x16xf32, #tpu.memory_space<vmem>>, vector<64x16xf32>
    tpu.vector_store %arg4[%c0_2, %c0_3], %7 {strides = array<i32>} : memref<64x16xf32, #tpu.memory_space<vmem>>, vector<64x16xf32>,
    return
  }
  func.func @transform_0(%arg0: i32, %arg1: i32) -> i32 {
    %c0_i32 = arith.constant 0 : i32
    %c0_i32_0 = arith.constant 0 : i32
    return %c0_i32 : i32
  }
  func.func @transform_1(%arg0: i32, %arg1: i32) -> (i32, i32) {
    %c0_i32 = arith.constant 0 : i32
    return %arg0, %arg1 : i32, i32
  }
  func.func @transform_2(%arg0: i32, %arg1: i32) -> (i32, i32) {
    %c0_i32 = arith.constant 0 : i32
    return %arg0, %arg1 : i32, i32
  }
}

</mosaic_0001>

<llo_original>
// kernel: tpu_custom_call.1
$region0: #{tpu_custom_call.1}
  #allocation0 [shape = 'u32[]', space=smem, size = 0x4, offset = 0x4, fixed_abs, tag = 'smem constant byte address 0x4 - core index']
  #allocation1 [shape = 'u32[144,128]{1,0:T(1,128)}', space=vmem, size = 0x12000, scoped, tag = 'internal scratch']
  #allocation2 [shape = 'f32[1]{0:T(128)S(6)}', space=smem, size = 0x200, scoped, tag = 'scoped memory for tpu_custom_call.1']
  %s0 = inlined_call_operand.<no memory space> [shape: f32[1], index: 0, kind: input, shape index: {}]
  %s1 = inlined_call_operand.vmem [shape: f32[128,16], index: 1, kind: input, shape index: {}]
  %s2 = inlined_call_operand.vmem [shape: f32[128,16], index: 2, kind: output, shape index: {}]
  %s3 = sld [smem:[#allocation0]]
  $region41: #{tpu_custom_call.1} parent=0
    _
  %s5 = ssub.s32 1, %s3
  %s6 = scalar_select 0, %s5, %s3
  %7 = sst [smem:[#allocation2]] %s0
  loop: start=0, step=1, limit=4
  $region2: #{tpu_custom_call.1} parent=0 // loop_pre_header
    _
  $region3: #{tpu_custom_call.1} parent=0 // loop_header
    %s9 = sphi 0, %s13
    %p10 = scmp.ge.s32.totalorder %s9, 4
    %s16 = sphi 0, %s28
    %s17 = sphi 0, %s24
    %s18 = sphi 0, %s16
    %s19 = sphi 0, %s17
    %s20 = sphi 0, %s18
    %s21 = sphi 0, %s19
    %s29 = sphi 0, %s29
    %s31 = sphi 0, %s29
    %s32 = sphi 0, %s31
    %s46 = sphi 0, %s32
    %s54 = sphi 0, %s56
    %s57 = sphi 0, %s54
    %s58 = sphi 0, %s57
    %s74 = sphi 0, %s58
    %s82 = sphi 0, %s84
    %s85 = sphi 0, %s82
    %s86 = sphi 0, %s85
    %s102 = sphi 0, %s86
  $region4: #{tpu_custom_call.1} parent=0 // loop_header_branch
    %12 = sbr.rel (%p10) target = $region8
  $region5: #{tpu_custom_call.1} parent=0 // loop_body
    %s14 = ssub.s32 %s9, 1
    %s15 = ssub.s32 %s9, 2
    %s22 = sadd.s32 1, %s17
    %p23 = scmp.ge.s32.totalorder %s22, 1
    %s24 = scalar_select %p23, 0, %s22
    %s25 = sadd.s32 1, %s16
    %s26 = scalar_select %p23, %s25, %s16
    %p27 = scmp.ge.s32.totalorder %s26, 2
    %s28 = scalar_select %p27, 0, %s26
    %s30 = sadd.s32 %s29, 1
    %p33 = scmp.eq.s32.totalorder %s9, 1
    %p34 = scmp.ne.s32.totalorder %s29, %s31
    %p35 = scmp.eq.s32.totalorder %s9, 0
    %p36 = por %p34, %p35
    %p37 = scmp.ne.s32.totalorder %s29, %s31
    %p38 = scmp.eq.s32.totalorder %s14, 1
    %p39 = por %p37, %p38
    %p40 = scmp.ne.s32.totalorder %s31, %s32
    %p41 = scmp.eq.s32.totalorder %s14, 0
    %p42 = por %p40, %p41
    %p43 = scmp.ne.s32.totalorder %s31, %s32
    %p44 = scmp.eq.s32.totalorder %s15, 1
    %p45 = por %p43, %p44
    %p47 = scmp.ne.s32.totalorder %s32, %s46
    %p48 = scmp.eq.s32.totalorder %s15, 0
    %p49 = por %p47, %p48
    %s50 = ssub.s32 %s16, %s28
    %s51 = ssub.s32 %s17, %s24
    %s52 = sor.u32 %s50, %s51
    %p53 = scmp.eq.s32.totalorder %s52, 0
    %s55 = sadd.s32 %s54, 1
    %s56 = scalar_select %p53, %s54, %s55
    %p59 = pneg %p53
    %p60 = scmp.eq.s32.totalorder %s9, 1
    %p61 = por %p59, %p60
    %p62 = scmp.ne.s32.totalorder %s54, %s57
    %p63 = scmp.eq.s32.totalorder %s9, 0
    %p64 = por %p62, %p63
    %p65 = scmp.ne.s32.totalorder %s54, %s57
    %p66 = scmp.eq.s32.totalorder %s14, 1
    %p67 = por %p65, %p66
    %p68 = scmp.ne.s32.totalorder %s57, %s58
    %p69 = scmp.eq.s32.totalorder %s14, 0
    %p70 = por %p68, %p69
    %p71 = scmp.ne.s32.totalorder %s57, %s58
    %p72 = scmp.eq.s32.totalorder %s15, 1
    %p73 = por %p71, %p72
    %p75 = scmp.ne.s32.totalorder %s58, %s74
    %p76 = scmp.eq.s32.totalorder %s15, 0
    %p77 = por %p75, %p76
    %s78 = ssub.s32 %s16, %s28
    %s79 = ssub.s32 %s17, %s24
    %s80 = sor.u32 %s78, %s79
    %p81 = scmp.eq.s32.totalorder %s80, 0
    %s83 = sadd.s32 %s82, 1
    %s84 = scalar_select %p81, %s82, %s83
    %p87 = pneg %p81
    %p88 = scmp.eq.s32.totalorder %s9, 1
    %p89 = por %p87, %p88
    %p90 = scmp.ne.s32.totalorder %s82, %s85
    %p91 = scmp.eq.s32.totalorder %s9, 0
    %p92 = por %p90, %p91
    %p93 = scmp.ne.s32.totalorder %s82, %s85
    %p94 = scmp.eq.s32.totalorder %s14, 1
    %p95 = por %p93, %p94
    %p96 = scmp.ne.s32.totalorder %s85, %s86
    %p97 = scmp.eq.s32.totalorder %s14, 0
    %p98 = por %p96, %p97
    %p99 = scmp.ne.s32.totalorder %s85, %s86
    %p100 = scmp.eq.s32.totalorder %s15, 1
    %p101 = por %p99, %p100
    %p103 = scmp.ne.s32.totalorder %s86, %s102
    %p104 = scmp.eq.s32.totalorder %s15, 0
    %p105 = por %p103, %p104
    %p106 = scmp.le.s32.totalorder 1, %s9
    %p107 = scmp.lt.s32.totalorder %s9, 3
    %p108 = pnand %p106, %p107
    %p109 = pneg %p108
    // Predicated region
    $region9: #{tpu_custom_call.1} parent=5 // pred_check
      _
    $region10: #{tpu_custom_call.1} parent=5 // pred_check_branch
      %111 = sbr.rel (%p108) target = $region12
    $region11: #{tpu_custom_call.1} parent=5 // pred_region
      %s112 = ssub.s32 %s9, 1
      // Predicated region
      $region13: #{tpu_custom_call.1} parent=11 // pred_check
        %p113 = pneg %p42
      $region14: #{tpu_custom_call.1} parent=11 // pred_check_branch
        %115 = sbr.rel (%p113) target = $region16
      $region15: #{tpu_custom_call.1} parent=11 // pred_region
        _
      $region16: #{tpu_custom_call.1} parent=11 // pred_fallthru
        _
    $region12: #{tpu_custom_call.1} parent=5 // pred_fallthru
      _
    %p116 = scmp.lt.s32.totalorder %s9, 2
    // Predicated region
    $region17: #{tpu_custom_call.1} parent=5 // pred_check
      %p117 = pneg %p116
    $region18: #{tpu_custom_call.1} parent=5 // pred_check_branch
      %119 = sbr.rel (%p117) target = $region20
    $region19: #{tpu_custom_call.1} parent=5 // pred_region
      // Predicated region
      $region21: #{tpu_custom_call.1} parent=19 // pred_check
        %p120 = pneg %p64
      $region22: #{tpu_custom_call.1} parent=19 // pred_check_branch
        %122 = sbr.rel (%p120) target = $region24
      $region23: #{tpu_custom_call.1} parent=19 // pred_region
        %s123 = smul.u32 8, %s16
        %p124 = scmp.lt.s32.totalorder %s123, 15
        %s125 = scalar_select %p124, %s123, 15
        %p126 = scmp.lt.s32.totalorder %s17, 0
        %s127 = scalar_select %p126, %s17, 0
        %s128 = sadd.s32 %s127, %s125
        %s129 = smul.addr %s128, 8
        %s130 = scalar_lea.vmem %s1, %s129
        %s131 = smul.u32 8, %s16
      $region24: #{tpu_custom_call.1} parent=19 // pred_fallthru
        _
    $region20: #{tpu_custom_call.1} parent=5 // pred_fallthru
      _
    %p132 = scmp.le.s32.totalorder 1, %s9
    %p133 = scmp.lt.s32.totalorder %s9, 3
    %p134 = pnand %p132, %p133
    %p135 = pneg %p134
    // Predicated region
    $region25: #{tpu_custom_call.1} parent=5 // pred_check
      _
    $region26: #{tpu_custom_call.1} parent=5 // pred_check_branch
      %137 = sbr.rel (%p134) target = $region28
    $region27: #{tpu_custom_call.1} parent=5 // pred_region
      %s138 = ssub.s32 %s9, 1
      %p139 = pneg %p42
      %p140 = pneg %p39
      %s141 = smul.u32 8, %s18
      %p142 = scmp.lt.s32.totalorder %s141, 15
      %s143 = scalar_select %p142, %s141, 15
      %p144 = scmp.lt.s32.totalorder %s19, 0
      %s145 = scalar_select %p144, %s19, 0
      %s146 = sadd.s32 %s145, %s143
      %s147 = smul.addr %s146, 8
      %s148 = scalar_lea.vmem %s1, %s147
      %p149 = pneg %p70
      %p150 = pneg %p67
      %p151 = pneg %p98
      %p152 = pneg %p95
      %s153 = smul.u32 8, %s18
      %p154 = scmp.lt.s32.totalorder %s153, 15
      %s155 = scalar_select %p154, %s153, 15
      %p156 = scmp.lt.s32.totalorder %s19, 0
      %s157 = scalar_select %p156, %s19, 0
      %s158 = sadd.s32 %s157, %s155
      %s159 = smul.addr %s158, 8
      %s160 = scalar_lea.vmem %s2, %s159
      %s161 = smul.u32 8, %s18
      %p162 = scmp.lt.s32.totalorder %s161, 15
      %s163 = scalar_select %p162, %s161, 15
      %p164 = scmp.lt.s32.totalorder %s19, 0
      %s165 = scalar_select %p164, %s19, 0
      %s166 = sadd.s32 %s165, %s163
      %s167 = smul.addr %s166, 8
      %s168 = scalar_lea.vmem %s1, %s167
      %s169 = smul.u32 8, %s18
      %s170 = smul.u32 8, %s18
      %p171 = scmp.lt.s32.totalorder %s170, 15
      %s172 = scalar_select %p171, %s170, 15
      %p173 = scmp.lt.s32.totalorder %s19, 0
      %s174 = scalar_select %p173, %s19, 0
      %s175 = sadd.s32 %s174, %s172
      %s176 = smul.addr %s175, 8
      %s177 = scalar_lea.vmem %s2, %s176
      %s178 = smul.u32 8, %s18
      %v179 = vld [vmem:[%s168] sm:$0xff]
      %v180 = vld [vmem:[%s168 + $0x8] sm:$0xff]
      %v181 = vld [vmem:[%s168 + $0x10] sm:$0xff]
      %v182 = vld [vmem:[%s168 + $0x18] sm:$0xff]
      %v183 = vld [vmem:[%s168 + $0x20] sm:$0xff]
      %v184 = vld [vmem:[%s168 + $0x28] sm:$0xff]
      %v185 = vld [vmem:[%s168 + $0x30] sm:$0xff]
      %v186 = vld [vmem:[%s168 + $0x38] sm:$0xff]
      %s187 = sld [smem:[#allocation2]]
      %s188 = ssub.f32 0.0, %s187
      %v189 = vstv %s188
      %v190 = vmax.f32 %v189, %v179
      %v191 = vmax.f32 %v189, %v180
      %v192 = vmax.f32 %v189, %v181
      %v193 = vmax.f32 %v189, %v182
      %v194 = vmax.f32 %v189, %v183
      %v195 = vmax.f32 %v189, %v184
      %v196 = vmax.f32 %v189, %v185
      %v197 = vmax.f32 %v189, %v186
      %v198 = vstv %s187
      %v199 = vmin.f32 %v198, %v190
      %v200 = vmin.f32 %v198, %v191
      %v201 = vmin.f32 %v198, %v192
      %v202 = vmin.f32 %v198, %v193
      %v203 = vmin.f32 %v198, %v194
      %v204 = vmin.f32 %v198, %v195
      %v205 = vmin.f32 %v198, %v196
      %v206 = vmin.f32 %v198, %v197
      %v207 = vsub.f32 %v179, %v199
      %v208 = vsub.f32 %v180, %v200
      %v209 = vsub.f32 %v181, %v201
      %v210 = vsub.f32 %v182, %v202
      %v211 = vsub.f32 %v183, %v203
      %v212 = vsub.f32 %v184, %v204
      %v213 = vsub.f32 %v185, %v205
      %v214 = vsub.f32 %v186, %v206
      %vm215 = vcmask 130048
      %216 = vst.msk [vmem:[%s177] sm:$0xff] %vm215, %v207
      %217 = vst.msk [vmem:[%s177 + $0x8] sm:$0xff] %vm215, %v208
      %218 = vst.msk [vmem:[%s177 + $0x10] sm:$0xff] %vm215, %v209
      %219 = vst.msk [vmem:[%s177 + $0x18] sm:$0xff] %vm215, %v210
      %220 = vst.msk [vmem:[%s177 + $0x20] sm:$0xff] %vm215, %v211
      %221 = vst.msk [vmem:[%s177 + $0x28] sm:$0xff] %vm215, %v212
      %222 = vst.msk [vmem:[%s177 + $0x30] sm:$0xff] %vm215, %v213
      %223 = vst.msk [vmem:[%s177 + $0x38] sm:$0xff] %vm215, %v214
      %s224 = smul.u32 8, %s18
      %p225 = scmp.lt.s32.totalorder %s224, 15
      %s226 = scalar_select %p225, %s224, 15
      %p227 = scmp.lt.s32.totalorder %s19, 0
      %s228 = scalar_select %p227, %s19, 0
      %s229 = sadd.s32 %s228, %s226
      %s230 = smul.addr %s229, 8
      %s231 = scalar_lea.vmem %s2, %s230
      // Predicated region
      $region29: #{tpu_custom_call.1} parent=27 // pred_check
        %p232 = pneg %p95
      $region30: #{tpu_custom_call.1} parent=27 // pred_check_branch
        %234 = sbr.rel (%p232) target = $region32
      $region31: #{tpu_custom_call.1} parent=27 // pred_region
        %s235 = smul.u32 8, %s18
      $region32: #{tpu_custom_call.1} parent=27 // pred_fallthru
        _
    $region28: #{tpu_custom_call.1} parent=5 // pred_fallthru
      _
    %p236 = scmp.le.s32.totalorder 2, %s9
    // Predicated region
    $region33: #{tpu_custom_call.1} parent=5 // pred_check
      %p237 = pneg %p236
    $region34: #{tpu_custom_call.1} parent=5 // pred_check_branch
      %239 = sbr.rel (%p237) target = $region36
    $region35: #{tpu_custom_call.1} parent=5 // pred_region
      %s240 = ssub.s32 %s9, 2
      // Predicated region
      $region37: #{tpu_custom_call.1} parent=35 // pred_check
        %p241 = pneg %p101
      $region38: #{tpu_custom_call.1} parent=35 // pred_check_branch
        %243 = sbr.rel (%p241) target = $region40
      $region39: #{tpu_custom_call.1} parent=35 // pred_region
        %s244 = smul.u32 8, %s20
        %p245 = scmp.lt.s32.totalorder %s244, 15
        %s246 = scalar_select %p245, %s244, 15
        %p247 = scmp.lt.s32.totalorder %s21, 0
        %s248 = scalar_select %p247, %s21, 0
        %s249 = sadd.s32 %s248, %s246
        %s250 = smul.addr %s249, 8
        %s251 = scalar_lea.vmem %s2, %s250
      $region40: #{tpu_custom_call.1} parent=35 // pred_fallthru
        _
    $region36: #{tpu_custom_call.1} parent=5 // pred_fallthru
      _
  $region6: #{tpu_custom_call.1} parent=0 // loop_footer
    %s13 = sadd.s32 1, %s9
  $region7: #{tpu_custom_call.1} parent=0 // loop_footer_branch
    %8 = sbr.rel target = $region3
  $region8: #{tpu_custom_call.1} parent=0 // loop_exit
    _

</llo_original>
